<compile_context>
chip_gen: v7x
topology: tpu7x:2x2x1
jax: 0.10.0
libtpu: 0.0.40
codegen_flags: <defaults>
</compile_context>

<pallas_src>
import functools

import jax
import jax.numpy as jnp
from jax import lax
from jax.experimental import pallas as pl
from jax.experimental.pallas import tpu as pltpu

EPS = 1e-5


# --------------------------------------------------------------------------
# Fused kernel: all stack_num layers for one block of channels.
# --------------------------------------------------------------------------
def _sep_stack_kernel(x_ref, w_ref, g_ref, b_ref, o_ref, xp_ref, *,
                      B, H, W, d, L, Cblk, bn):
    """x_ref  : (B, Cblk, H*W)          input block, spatial flattened (lane dense)
       w_ref  : (L*9, Cblk, 1)          depthwise 3x3 taps, all layers (VMEM)
       g_ref  : (L, Cblk, 1)            conv bias (bn=False) or BN gamma (bn=True)
       b_ref  : (L, Cblk, 1)            unused    (bn=False) or BN beta  (bn=True)
       o_ref  : (B, Cblk, H*W)          output block (written once, after last layer)
       xp_ref : (B, Cblk, H*W + 2*pad)  flat zero-padded activation scratch"""
    HW = H * W
    pad = d * (W + 1)
    inv_n = 1.0 / float(B * HW)

    # W-boundary lane masks (computed once; the flat zero halo of xp_ref handles the
    # H boundary for free, so only the two w-direction masks are needed).
    iota = lax.broadcasted_iota(jnp.int32, (1, 1, HW), 2)
    w_pos = jnp.bitwise_and(iota, W - 1) if (W & (W - 1)) == 0 else iota % W
    mask_left = (w_pos >= d).astype(jnp.float32)        # tap with dw = -d
    mask_right = (w_pos < W - d).astype(jnp.float32)    # tap with dw = +d
    lane_masks = (mask_left, None, mask_right)          # indexed by kw

    # Zero the scratch once per grid step; only the halo actually needs it (the
    # interior is rewritten every layer) but a single full clear is negligible.
    xp_ref[...] = jnp.zeros_like(xp_ref)

    cur = x_ref[...]
    for l in range(L):                                   # static unroll over the stack
        # activation -> interior of the flat padded scratch (halo stays zero)
        xp_ref[:, :, pad:pad + HW] = cur

        # depthwise 3x3 dilated conv, channel-vectorized: 9 lane-dense FMAs
        acc = jnp.zeros((B, Cblk, HW), jnp.float32)
        for kh in range(3):
            for kw in range(3):
                t = 3 * kh + kw
                wv = w_ref[l * 9 + t:l * 9 + t + 1]      # (1, Cblk, 1)
                m = lane_masks[kw]
                wm = wv if m is None else wv * m         # (1,Cblk,1) or (1,Cblk,HW)
                start = pad + (kh - 1) * d * W + (kw - 1) * d
                acc = acc + xp_ref[:, :, start:start + HW] * wm

        if bn:
            # two-pass biased batch statistics over (B, H, W), per channel
            s = jnp.sum(acc, axis=2, keepdims=True)                   # (B, Cblk, 1)
            mean = jnp.sum(s, axis=0, keepdims=True) * inv_n          # (1, Cblk, 1)
            cen = acc - mean
            q = jnp.sum(cen * cen, axis=2, keepdims=True)
            var = jnp.sum(q, axis=0, keepdims=True) * inv_n
            scale = lax.rsqrt(var + EPS) * g_ref[l:l + 1]
            y = cen * scale + b_ref[l:l + 1]
        else:
            y = acc + g_ref[l:l + 1]                                   # conv bias

        cur = jnp.maximum(y, 0.0)                                      # ReLU

    o_ref[...] = cur                                     # single lane-dense store


def _pick_cblk(C, max_blk=64, min_steps=2):
    """Largest multiple-of-8 divisor of C (<= max_blk) leaving >= min_steps grid
    steps (feeds both v7x TensorCores); otherwise the whole channel axis in one
    step (tiny-C case, where the problem fits one block anyway)."""
    best = None
    for cand in range(8, min(C, max_blk) + 1, 8):
        if C % cand == 0 and C // cand >= min_steps:
            best = cand
    return best if best is not None else C


def sep_conv_stack_forward(x, wk, p1, p2, *, dilation=1, stack_num=1,
                           batch_norm=False):
    """Forward pass of Sep_CONV_stack.

    x  : (B, C, H, W) float32
    wk : (stack_num, C, 3, 3) depthwise conv weights
    p1 : (stack_num, C) conv bias (batch_norm=False) or BN gamma (batch_norm=True)
    p2 : (stack_num, C) zeros     (batch_norm=False) or BN beta  (batch_norm=True)
    """
    B, C, H, W = x.shape
    L, d = stack_num, dilation
    assert wk.shape == (L, C, 3, 3) and p1.shape == (L, C) and p2.shape == (L, C)

    HW = H * W
    Cblk = _pick_cblk(C)
    pad = d * (W + 1)

    # lane-dense layouts: spatial flattened onto the last axis (free XLA reshapes)
    x2 = x.reshape(B, C, HW)
    w3 = jnp.transpose(wk.reshape(L, C, 9), (0, 2, 1)).reshape(L * 9, C, 1)
    g3 = p1[..., None]                                   # (L, C, 1)
    b3 = p2[..., None]                                   # (L, C, 1)

    kern = functools.partial(_sep_stack_kernel, B=B, H=H, W=W, d=d, L=L,
                             Cblk=Cblk, bn=batch_norm)

    out2 = pl.pallas_call(
        kern,
        out_shape=jax.ShapeDtypeStruct((B, C, HW), jnp.float32),
        grid=(C // Cblk,),
        in_specs=[
            pl.BlockSpec((B, Cblk, HW), lambda i: (0, i, 0)),          # x block
            pl.BlockSpec((L * 9, Cblk, 1), lambda i: (0, i, 0)),       # conv weights
            pl.BlockSpec((L, Cblk, 1), lambda i: (0, i, 0)),           # bias / gamma
            pl.BlockSpec((L, Cblk, 1), lambda i: (0, i, 0)),           # beta
        ],
        out_specs=pl.BlockSpec((B, Cblk, HW), lambda i: (0, i, 0)),
        scratch_shapes=[pltpu.VMEM((B, Cblk, HW + 2 * pad), jnp.float32)],
        compiler_params=pltpu.CompilerParams(
            dimension_semantics=("parallel",),
        ),
    )(x2, w3, g3, b3)
    return out2.reshape(B, C, H, W)


# --------------------------------------------------------------------------
# Pure-JAX reference (independent code path) for validation.
# --------------------------------------------------------------------------
def reference_forward(x, wk, p1, p2, *, dilation=1, stack_num=1, batch_norm=False):
    B, C, H, W = x.shape
    cur = x
    for l in range(stack_num):
        w = wk[l][:, None, :, :]                                      # (C,1,3,3)
        y = lax.conv_general_dilated(
            cur, w, window_strides=(1, 1),
            padding=[(dilation, dilation), (dilation, dilation)],
            rhs_dilation=(dilation, dilation),
            dimension_numbers=("NCHW", "OIHW", "NCHW"),
            feature_group_count=C)
        if batch_norm:
            m = y.mean(axis=(0, 2, 3), keepdims=True)
            v = ((y - m) ** 2).mean(axis=(0, 2, 3), keepdims=True)
            y = ((y - m) / jnp.sqrt(v + EPS) * p1[l][None, :, None, None]
                 + p2[l][None, :, None, None])
        else:
            y = y + p1[l][None, :, None, None]
        cur = jnp.maximum(y, 0.0)
    return cur


if __name__ == "__main__":
    key = jax.random.PRNGKey(0)

    configs = [
        # module defaults: depthwise conv + bias + ReLU, no BN
        dict(B=2, C=4, H=16, W=16, stack_num=1, dilation=1, batch_norm=False),
        # stacked, dilated, batch-normalised variant (ASPP-style block)
        dict(B=2, C=8, H=16, W=16, stack_num=2, dilation=2, batch_norm=True),
        # larger channel count -> exercises the multi-step channel-blocked grid
        dict(B=2, C=16, H=16, W=16, stack_num=2, dilation=1, batch_norm=True),
    ]

    for cfg in configs:
        key, kx, kw, kp1, kp2 = jax.random.split(key, 5)
        B, C, H, W = cfg["B"], cfg["C"], cfg["H"], cfg["W"]
        L = cfg["stack_num"]

        x = jax.random.normal(kx, (B, C, H, W), jnp.float32)
        wk = 0.3 * jax.random.normal(kw, (L, C, 3, 3), jnp.float32)
        if cfg["batch_norm"]:
            p1 = 1.0 + 0.1 * jax.random.normal(kp1, (L, C), jnp.float32)   # gamma
            p2 = 0.1 * jax.random.normal(kp2, (L, C), jnp.float32)         # beta
        else:
            p1 = 0.1 * jax.random.normal(kp1, (L, C), jnp.float32)         # conv bias
            p2 = jnp.zeros((L, C), jnp.float32)

        out = sep_conv_stack_forward(
            x, wk, p1, p2, dilation=cfg["dilation"], stack_num=L,
            batch_norm=cfg["batch_norm"])
        out = jax.block_until_ready(out)
        assert out.shape == (B, C, H, W), out.shape

        ref = reference_forward(
            x, wk, p1, p2, dilation=cfg["dilation"], stack_num=L,
            batch_norm=cfg["batch_norm"])
        err = float(jnp.max(jnp.abs(out - ref)))
        assert err < 5e-4, f"max abs err {err} for cfg {cfg}"

    print("KERNEL_OK")
</pallas_src>

<mosaic_0001>
module attributes {stable_mosaic.version = 11 : i64} {
  func.func @_sep_stack_kernel(%arg0: i32, %arg1: memref<2x4x256xf32, #tpu.memory_space<vmem>>, %arg2: memref<9x4x1xf32, #tpu.memory_space<vmem>>, %arg3: memref<1x4x1xf32, #tpu.memory_space<vmem>>, %arg4: memref<1x4x1xf32, #tpu.memory_space<vmem>>, %arg5: memref<2x4x256xf32, #tpu.memory_space<vmem>>, %arg6: memref<2x4x290xf32, #tpu.memory_space<vmem>>) attributes {dimension_semantics = [#tpu.dimension_semantics<parallel>], iteration_bounds = array<i64: 1>, scalar_prefetch = 0 : i64, scratch_operands = 1 : i64, tpu.core_type = #tpu.core_type<tc>, window_params = [{transform_indices = @transform_0, window_bounds = array<i64: 2, 4, 256>}, {transform_indices = @transform_1, window_bounds = array<i64: 9, 4, 1>}, {transform_indices = @transform_2, window_bounds = array<i64: 1, 4, 1>}, {transform_indices = @transform_3, window_bounds = array<i64: 1, 4, 1>}, {transform_indices = @transform_4, window_bounds = array<i64: 2, 4, 256>}]} {
    %0 = tpu.iota {dimensions = array<i32: 2>} : vector<1x1x256xi32>
    %c15_i32 = arith.constant 15 : i32
    %1 = vector.broadcast %c15_i32 : i32 to vector<1x1x256xi32>
    %2 = arith.andi %0, %1 : vector<1x1x256xi32>
    %c1_i32 = arith.constant 1 : i32
    %3 = vector.broadcast %c1_i32 : i32 to vector<1x1x256xi32>
    %4 = arith.cmpi sge, %2, %3 : vector<1x1x256xi32>
    %5 = arith.extui %4 : vector<1x1x256xi1> to vector<1x1x256xi32>
    %6 = arith.sitofp %5 : vector<1x1x256xi32> to vector<1x1x256xf32>
    %c15_i32_0 = arith.constant 15 : i32
    %7 = vector.broadcast %c15_i32_0 : i32 to vector<1x1x256xi32>
    %8 = arith.cmpi slt, %2, %7 : vector<1x1x256xi32>
    %9 = arith.extui %8 : vector<1x1x256xi1> to vector<1x1x256xi32>
    %10 = arith.sitofp %9 : vector<1x1x256xi32> to vector<1x1x256xf32>
    %cst = arith.constant 0.000000e+00 : f32
    %11 = vector.broadcast %cst : f32 to vector<2x4x290xf32>
    %c0 = arith.constant 0 : index
    %c0_1 = arith.constant 0 : index
    %c0_2 = arith.constant 0 : index
    %12 = vector.load %arg6[%c0, %c0_1, %c0_2] : memref<2x4x290xf32, #tpu.memory_space<vmem>>, vector<2x4x290xf32>
    tpu.vector_store %arg6[%c0, %c0_1, %c0_2], %11 {strides = array<i32>} : memref<2x4x290xf32, #tpu.memory_space<vmem>>, vector<2x4x290xf32>,
    %c0_3 = arith.constant 0 : index
    %c0_4 = arith.constant 0 : index
    %c0_5 = arith.constant 0 : index
    %13 = vector.load %arg1[%c0_3, %c0_4, %c0_5] : memref<2x4x256xf32, #tpu.memory_space<vmem>>, vector<2x4x256xf32>
    %c0_6 = arith.constant 0 : index
    %c0_7 = arith.constant 0 : index
    %c17 = arith.constant 17 : index
    %14 = vector.load %arg6[%c0_6, %c0_7, %c17] : memref<2x4x290xf32, #tpu.memory_space<vmem>>, vector<2x4x256xf32>
    tpu.vector_store %arg6[%c0_6, %c0_7, %c17], %13 {strides = array<i32>} : memref<2x4x290xf32, #tpu.memory_space<vmem>>, vector<2x4x256xf32>,
    %cst_8 = arith.constant 0.000000e+00 : f32
    %15 = vector.broadcast %cst_8 : f32 to vector<2x4x256xf32>
    %c0_9 = arith.constant 0 : index
    %c0_10 = arith.constant 0 : index
    %c0_11 = arith.constant 0 : index
    %16 = vector.load %arg2[%c0_9, %c0_10, %c0_11] : memref<9x4x1xf32, #tpu.memory_space<vmem>>, vector<1x4x1xf32>
    %17 = vector.broadcast %16 : vector<1x4x1xf32> to vector<1x4x256xf32>
    %18 = vector.broadcast %6 : vector<1x1x256xf32> to vector<1x4x256xf32>
    %19 = arith.mulf %17, %18 : vector<1x4x256xf32>
    %c0_12 = arith.constant 0 : index
    %c0_13 = arith.constant 0 : index
    %c0_14 = arith.constant 0 : index
    %20 = vector.load %arg6[%c0_12, %c0_13, %c0_14] : memref<2x4x290xf32, #tpu.memory_space<vmem>>, vector<2x4x256xf32>
    %21 = vector.broadcast %19 : vector<1x4x256xf32> to vector<2x4x256xf32>
    %22 = arith.mulf %20, %21 : vector<2x4x256xf32>
    %23 = arith.addf %15, %22 : vector<2x4x256xf32>
    %c1 = arith.constant 1 : index
    %c0_15 = arith.constant 0 : index
    %c0_16 = arith.constant 0 : index
    %24 = vector.load %arg2[%c1, %c0_15, %c0_16] : memref<9x4x1xf32, #tpu.memory_space<vmem>>, vector<1x4x1xf32>
    %c0_17 = arith.constant 0 : index
    %c0_18 = arith.constant 0 : index
    %c1_19 = arith.constant 1 : index
    %25 = vector.load %arg6[%c0_17, %c0_18, %c1_19] : memref<2x4x290xf32, #tpu.memory_space<vmem>>, vector<2x4x256xf32>
    %26 = vector.broadcast %24 : vector<1x4x1xf32> to vector<2x4x256xf32>
    %27 = arith.mulf %25, %26 : vector<2x4x256xf32>
    %28 = arith.addf %23, %27 : vector<2x4x256xf32>
    %c2 = arith.constant 2 : index
    %c0_20 = arith.constant 0 : index
    %c0_21 = arith.constant 0 : index
    %29 = vector.load %arg2[%c2, %c0_20, %c0_21] : memref<9x4x1xf32, #tpu.memory_space<vmem>>, vector<1x4x1xf32>
    %30 = vector.broadcast %29 : vector<1x4x1xf32> to vector<1x4x256xf32>
    %31 = vector.broadcast %10 : vector<1x1x256xf32> to vector<1x4x256xf32>
    %32 = arith.mulf %30, %31 : vector<1x4x256xf32>
    %c0_22 = arith.constant 0 : index
    %c0_23 = arith.constant 0 : index
    %c2_24 = arith.constant 2 : index
    %33 = vector.load %arg6[%c0_22, %c0_23, %c2_24] : memref<2x4x290xf32, #tpu.memory_space<vmem>>, vector<2x4x256xf32>
    %34 = vector.broadcast %32 : vector<1x4x256xf32> to vector<2x4x256xf32>
    %35 = arith.mulf %33, %34 : vector<2x4x256xf32>
    %36 = arith.addf %28, %35 : vector<2x4x256xf32>
    %c3 = arith.constant 3 : index
    %c0_25 = arith.constant 0 : index
    %c0_26 = arith.constant 0 : index
    %37 = vector.load %arg2[%c3, %c0_25, %c0_26] : memref<9x4x1xf32, #tpu.memory_space<vmem>>, vector<1x4x1xf32>
    %38 = vector.broadcast %37 : vector<1x4x1xf32> to vector<1x4x256xf32>
    %39 = vector.broadcast %6 : vector<1x1x256xf32> to vector<1x4x256xf32>
    %40 = arith.mulf %38, %39 : vector<1x4x256xf32>
    %c0_27 = arith.constant 0 : index
    %c0_28 = arith.constant 0 : index
    %c16 = arith.constant 16 : index
    %41 = vector.load %arg6[%c0_27, %c0_28, %c16] : memref<2x4x290xf32, #tpu.memory_space<vmem>>, vector<2x4x256xf32>
    %42 = vector.broadcast %40 : vector<1x4x256xf32> to vector<2x4x256xf32>
    %43 = arith.mulf %41, %42 : vector<2x4x256xf32>
    %44 = arith.addf %36, %43 : vector<2x4x256xf32>
    %c4 = arith.constant 4 : index
    %c0_29 = arith.constant 0 : index
    %c0_30 = arith.constant 0 : index
    %45 = vector.load %arg2[%c4, %c0_29, %c0_30] : memref<9x4x1xf32, #tpu.memory_space<vmem>>, vector<1x4x1xf32>
    %c0_31 = arith.constant 0 : index
    %c0_32 = arith.constant 0 : index
    %c17_33 = arith.constant 17 : index
    %46 = vector.load %arg6[%c0_31, %c0_32, %c17_33] : memref<2x4x290xf32, #tpu.memory_space<vmem>>, vector<2x4x256xf32>
    %47 = vector.broadcast %45 : vector<1x4x1xf32> to vector<2x4x256xf32>
    %48 = arith.mulf %46, %47 : vector<2x4x256xf32>
    %49 = arith.addf %44, %48 : vector<2x4x256xf32>
    %c5 = arith.constant 5 : index
    %c0_34 = arith.constant 0 : index
    %c0_35 = arith.constant 0 : index
    %50 = vector.load %arg2[%c5, %c0_34, %c0_35] : memref<9x4x1xf32, #tpu.memory_space<vmem>>, vector<1x4x1xf32>
    %51 = vector.broadcast %50 : vector<1x4x1xf32> to vector<1x4x256xf32>
    %52 = vector.broadcast %10 : vector<1x1x256xf32> to vector<1x4x256xf32>
    %53 = arith.mulf %51, %52 : vector<1x4x256xf32>
    %c0_36 = arith.constant 0 : index
    %c0_37 = arith.constant 0 : index
    %c18 = arith.constant 18 : index
    %54 = vector.load %arg6[%c0_36, %c0_37, %c18] : memref<2x4x290xf32, #tpu.memory_space<vmem>>, vector<2x4x256xf32>
    %55 = vector.broadcast %53 : vector<1x4x256xf32> to vector<2x4x256xf32>
    %56 = arith.mulf %54, %55 : vector<2x4x256xf32>
    %57 = arith.addf %49, %56 : vector<2x4x256xf32>
    %c6 = arith.constant 6 : index
    %c0_38 = arith.constant 0 : index
    %c0_39 = arith.constant 0 : index
    %58 = vector.load %arg2[%c6, %c0_38, %c0_39] : memref<9x4x1xf32, #tpu.memory_space<vmem>>, vector<1x4x1xf32>
    %59 = vector.broadcast %58 : vector<1x4x1xf32> to vector<1x4x256xf32>
    %60 = vector.broadcast %6 : vector<1x1x256xf32> to vector<1x4x256xf32>
    %61 = arith.mulf %59, %60 : vector<1x4x256xf32>
    %c0_40 = arith.constant 0 : index
    %c0_41 = arith.constant 0 : index
    %c32 = arith.constant 32 : index
    %62 = vector.load %arg6[%c0_40, %c0_41, %c32] : memref<2x4x290xf32, #tpu.memory_space<vmem>>, vector<2x4x256xf32>
    %63 = vector.broadcast %61 : vector<1x4x256xf32> to vector<2x4x256xf32>
    %64 = arith.mulf %62, %63 : vector<2x4x256xf32>
    %65 = arith.addf %57, %64 : vector<2x4x256xf32>
    %c7 = arith.constant 7 : index
    %c0_42 = arith.constant 0 : index
    %c0_43 = arith.constant 0 : index
    %66 = vector.load %arg2[%c7, %c0_42, %c0_43] : memref<9x4x1xf32, #tpu.memory_space<vmem>>, vector<1x4x1xf32>
    %c0_44 = arith.constant 0 : index
    %c0_45 = arith.constant 0 : index
    %c33 = arith.constant 33 : index
    %67 = vector.load %arg6[%c0_44, %c0_45, %c33] : memref<2x4x290xf32, #tpu.memory_space<vmem>>, vector<2x4x256xf32>
    %68 = vector.broadcast %66 : vector<1x4x1xf32> to vector<2x4x256xf32>
    %69 = arith.mulf %67, %68 : vector<2x4x256xf32>
    %70 = arith.addf %65, %69 : vector<2x4x256xf32>
    %c8 = arith.constant 8 : index
    %c0_46 = arith.constant 0 : index
    %c0_47 = arith.constant 0 : index
    %71 = vector.load %arg2[%c8, %c0_46, %c0_47] : memref<9x4x1xf32, #tpu.memory_space<vmem>>, vector<1x4x1xf32>
    %72 = vector.broadcast %71 : vector<1x4x1xf32> to vector<1x4x256xf32>
    %73 = vector.broadcast %10 : vector<1x1x256xf32> to vector<1x4x256xf32>
    %74 = arith.mulf %72, %73 : vector<1x4x256xf32>
    %c0_48 = arith.constant 0 : index
    %c0_49 = arith.constant 0 : index
    %c34 = arith.constant 34 : index
    %75 = vector.load %arg6[%c0_48, %c0_49, %c34] : memref<2x4x290xf32, #tpu.memory_space<vmem>>, vector<2x4x256xf32>
    %76 = vector.broadcast %74 : vector<1x4x256xf32> to vector<2x4x256xf32>
    %77 = arith.mulf %75, %76 : vector<2x4x256xf32>
    %78 = arith.addf %70, %77 : vector<2x4x256xf32>
    %c0_50 = arith.constant 0 : index
    %c0_51 = arith.constant 0 : index
    %c0_52 = arith.constant 0 : index
    %79 = vector.load %arg3[%c0_50, %c0_51, %c0_52] : memref<1x4x1xf32, #tpu.memory_space<vmem>>, vector<1x4x1xf32>
    %80 = vector.broadcast %79 : vector<1x4x1xf32> to vector<2x4x256xf32>
    %81 = arith.addf %78, %80 : vector<2x4x256xf32>
    %cst_53 = arith.constant 0.000000e+00 : f32
    %82 = vector.broadcast %cst_53 : f32 to vector<2x4x256xf32>
    %83 = arith.maximumf %81, %82 : vector<2x4x256xf32>
    %c0_54 = arith.constant 0 : index
    %c0_55 = arith.constant 0 : index
    %c0_56 = arith.constant 0 : index
    %84 = vector.load %arg5[%c0_54, %c0_55, %c0_56] : memref<2x4x256xf32, #tpu.memory_space<vmem>>, vector<2x4x256xf32>
    tpu.vector_store %arg5[%c0_54, %c0_55, %c0_56], %83 {strides = array<i32>} : memref<2x4x256xf32, #tpu.memory_space<vmem>>, vector<2x4x256xf32>,
    return
  }
  func.func @transform_0(%arg0: i32) -> (i32, i32, i32) {
    %c0_i32 = arith.constant 0 : i32
    %c0_i32_0 = arith.constant 0 : i32
    %c0_i32_1 = arith.constant 0 : i32
    return %c0_i32, %arg0, %c0_i32_0 : i32, i32, i32
  }
  func.func @transform_1(%arg0: i32) -> (i32, i32, i32) {
    %c0_i32 = arith.constant 0 : i32
    %c0_i32_0 = arith.constant 0 : i32
    %c0_i32_1 = arith.constant 0 : i32
    return %c0_i32, %arg0, %c0_i32_0 : i32, i32, i32
  }
  func.func @transform_2(%arg0: i32) -> (i32, i32, i32) {
    %c0_i32 = arith.constant 0 : i32
    %c0_i32_0 = arith.constant 0 : i32
    %c0_i32_1 = arith.constant 0 : i32
    return %c0_i32, %arg0, %c0_i32_0 : i32, i32, i32
  }
  func.func @transform_3(%arg0: i32) -> (i32, i32, i32) {
    %c0_i32 = arith.constant 0 : i32
    %c0_i32_0 = arith.constant 0 : i32
    %c0_i32_1 = arith.constant 0 : i32
    return %c0_i32, %arg0, %c0_i32_0 : i32, i32, i32
  }
  func.func @transform_4(%arg0: i32) -> (i32, i32, i32) {
    %c0_i32 = arith.constant 0 : i32
    %c0_i32_0 = arith.constant 0 : i32
    %c0_i32_1 = arith.constant 0 : i32
    return %c0_i32, %arg0, %c0_i32_0 : i32, i32, i32
  }
}

</mosaic_0001>

<llo_original>
// kernel: tpu_custom_call.1
$region0: #{tpu_custom_call.1}
  #allocation0 [shape = 'u32[]', space=smem, size = 0x4, offset = 0x4, fixed_abs, tag = 'smem constant byte address 0x4 - core index']
  #allocation1 [shape = 'u32[144,128]{1,0:T(1,128)}', space=vmem, size = 0x12000, scoped, tag = 'internal scratch']
  #allocation2 [shape = 'f32[2,4,290]{2,1,0:T(4,128)}', space=vmem, size = 0x3000, scoped, tag = 'scratch operand']
  %s0 = inlined_call_operand.vmem [shape: f32[2,4,256], index: 0, kind: input, shape index: {}]
  %s1 = inlined_call_operand.vmem [shape: f32[9,4,1], index: 1, kind: input, shape index: {}]
  %s2 = inlined_call_operand.vmem [shape: f32[1,4,1], index: 2, kind: input, shape index: {}]
  %s3 = inlined_call_operand.vmem [shape: f32[1,4,1], index: 3, kind: input, shape index: {}]
  %s4 = inlined_call_operand.hbm [shape: f32[2,4,256], index: 4, kind: output, shape index: {}]
  %s5 = sld [smem:[#allocation0]]
  $region26: #{tpu_custom_call.1} parent=0
    _
  %s7 = ssub.s32 1, %s5
  %s8 = scalar_select 0, %s7, %s5
  $region1: #{tpu_custom_call.1} parent=0
    #allocation3 [shape = 'u8[8192]{0}', space=vmem, size = 0x2000, scoped, tag = 'output window, operand 0, single buffered']
    #allocation4 [shape = 's32[1]{0}', space=sflag, size = 0x4, scoped, tag = 'scoped memory for tpu_custom_call.1']
    %9 = vsyncpa [#allocation4], 0
    // Predicated region
    $region2: #{tpu_custom_call.1} parent=1 // pred_check
      _
    $region3: #{tpu_custom_call.1} parent=1 // pred_check_branch
      %11 = sbr.rel (0) target = $region5
    $region4: #{tpu_custom_call.1} parent=1 // pred_region
      _
    $region5: #{tpu_custom_call.1} parent=1 // pred_fallthru
      _
    // Predicated region
    $region6: #{tpu_custom_call.1} parent=1 // pred_check
      _
    $region7: #{tpu_custom_call.1} parent=1 // pred_check_branch
      %13 = sbr.rel (0) target = $region9
    $region8: #{tpu_custom_call.1} parent=1 // pred_region
      _
    $region9: #{tpu_custom_call.1} parent=1 // pred_fallthru
      _
    // Predicated region
    $region10: #{tpu_custom_call.1} parent=1 // pred_check
      _
    $region11: #{tpu_custom_call.1} parent=1 // pred_check_branch
      %15 = sbr.rel (0) target = $region13
    $region12: #{tpu_custom_call.1} parent=1 // pred_region
      _
    $region13: #{tpu_custom_call.1} parent=1 // pred_fallthru
      _
    // Predicated region
    $region14: #{tpu_custom_call.1} parent=1 // pred_check
      _
    $region15: #{tpu_custom_call.1} parent=1 // pred_check_branch
      %17 = sbr.rel (0) target = $region17
    $region16: #{tpu_custom_call.1} parent=1 // pred_region
      _
    $region17: #{tpu_custom_call.1} parent=1 // pred_fallthru
      _
    %v18 = vlaneseq
    %v19 = vand.u32 %v18, 127
    %v20 = vadd.s32 %v19, 128
    %v21 = vand.u32 %v19, 15
    %v22 = vand.u32 %v20, 15
    %vm23 = vcmp.ge.s32.totalorder %v21, 1
    %vm24 = vcmp.ge.s32.totalorder %v22, 1
    %v25 = vsel %vm23, 1, 0
    %v26 = vsel %vm24, 1, 0
    %v27 = vcvt.s32.f32 %v25
    %v28 = vcvt.s32.f32 %v26
    %vm29 = vcmp.lt.s32.totalorder %v21, 15
    %vm30 = vcmp.lt.s32.totalorder %v22, 15
    %v31 = vsel %vm29, 1, 0
    %v32 = vsel %vm30, 1, 0
    %v33 = vcvt.s32.f32 %v31
    %v34 = vcvt.s32.f32 %v32
    %35 = vst [vmem:[#allocation2] sm:$0xff] 0.0
    %vm36 = vcmask 273408
    %37 = vst.msk [vmem:[#allocation2 + $0x8] sm:$0xf] %vm36, 0.0
    %38 = vst [vmem:[#allocation2 + $0xc] sm:$0xff] 0.0
    %39 = vst.msk [vmem:[#allocation2 + $0x14] sm:$0xf] %vm36, 0.0
    %v40 = vld [vmem:[%s0] sm:$0xff]
    %v41 = vld [vmem:[%s0 + $0x8] sm:$0xff]
    %44 = vrot.lane.b32.xlu0 %v40, 17
    %v45 = vpop.permute.xlu0 %44
    %46 = vrot.lane.b32.xlu0 %v41, 17
    %v47 = vpop.permute.xlu0 %46
    %v48 = vrot.slane %v45, 4
    %v49 = vrot.slane %v47, 4
    %vm50 = vcmask 138240
    %v51 = vsel %vm50, %v48, %v45
    %v52 = vsel %vm50, %v49, %v47
    %vm57 = vcmask 1043592
    %vm58 = vcmask 1047556
    %vm59 = vmor %vm58, %vm57
    %60 = vst.msk [vmem:[#allocation2] sm:$0xff] %vm59, %v51
    %vm61 = vcmask 134144
    %62 = vst.msk [vmem:[#allocation2 + $0x8] sm:$0xf] %vm61, %v48
    %63 = vst.msk [vmem:[#allocation2 + $0xc] sm:$0xff] %vm59, %v52
    %64 = vst.msk [vmem:[#allocation2 + $0x14] sm:$0xf] %vm61, %v49
    %v65 = vld [vmem:[%s1] sm:$0xf]
    %67 = vset.pattern.permute.xlu0 0
    %68 = vperm.xlu0 %67, %v65
    %v69 = vpop.permute.xlu0 %68
    %v71 = vmul.f32 %v69, %v27
    %v72 = vmul.f32 %v69, %v28
    %v73 = vld [vmem:[#allocation2] sm:$0xff]
    %v74 = vld [vmem:[#allocation2 + $0xc] sm:$0xff]
    %v77 = vcombine.low %v71, %v72
    %v79 = vmul.f32 %v73, %v77
    %v80 = vmul.f32 %v74, %v77
    %v81 = vadd.f32 %v79, 0.0
    %v82 = vadd.f32 %v80, 0.0
    %s83 = scalar_lea.vmem %s1, 4
    %v84 = vld [vmem:[%s83] sm:$0xf]
    %v85 = vld [vmem:[#allocation2 + $0x8] sm:$0xf]
    %v86 = vld [vmem:[#allocation2 + $0x14] sm:$0xf]
    %88 = vset.pattern.permute.xlu0 0
    %89 = vperm.xlu0 %88, %v84
    %v90 = vpop.permute.xlu0 %89
    %v92 = vunpack.c.l.s4 839922192
    %v93 = vunpack.c.0.s8 %v92
    %v94 = vlaneseq
    %v95 = vshrl.u32 %v94, 7
    %v96 = vsub.s32 %v93, %v95
    %v97 = vrot.slane %v90, %v96
    %v99 = vmul.f32 %v73, %v97
    %v100 = vmul.f32 %v85, %v97
    %v101 = vmul.f32 %v74, %v97
    %v102 = vmul.f32 %v86, %v97
    %107 = vrot.lane.b32.xlu0 %v99, 127
    %v108 = vpop.permute.xlu0 %107
    %109 = vrot.lane.b32.xlu0 %v100, 127
    %v110 = vpop.permute.xlu0 %109
    %111 = vrot.lane.b32.xlu0 %v101, 127
    %v112 = vpop.permute.xlu0 %111
    %113 = vrot.lane.b32.xlu0 %v102, 127
    %v114 = vpop.permute.xlu0 %113
    %v115 = vrot.slane %v108, 4
    %v116 = vrot.slane %v110, 4
    %v117 = vrot.slane %v112, 4
    %v118 = vrot.slane %v114, 4
    %vm119 = vcmask 1043456
    %v120 = vsel %vm119, %v115, %v116
    %vm121 = vcmask 1039360
    %v122 = vsel %vm121, %v108, %v120
    %v123 = vsel %vm119, %v117, %v118
    %v124 = vsel %vm121, %v112, %v123
    %v127 = vadd.f32 %v81, %v122
    %v128 = vadd.f32 %v82, %v124
    %s129 = scalar_lea.vmem %s1, 8
    %v130 = vld [vmem:[%s129] sm:$0xf]
    %132 = vset.pattern.permute.xlu0 0
    %133 = vperm.xlu0 %132, %v130
    %v134 = vpop.permute.xlu0 %133
    %v136 = vmul.f32 %v134, %v33
    %v137 = vmul.f32 %v134, %v34
    %v140 = vcombine.low %v136, %v137
    %141 = vrot.lane.b32.xlu0 %v140, 2
    %v142 = vpop.permute.xlu0 %141
    %v143 = vrot.slane %v142, 4
    %vm144 = vcmask 15360
    %v145 = vsel %vm144, %v143, %v142
    %v148 = vmul.f32 %v73, %v145
    %v149 = vmul.f32 %v85, %v143
    %v150 = vmul.f32 %v74, %v145
    %v151 = vmul.f32 %v86, %v143
    %156 = vrot.lane.b32.xlu0 %v148, 126
    %v157 = vpop.permute.xlu0 %156
    %158 = vrot.lane.b32.xlu0 %v149, 126
    %v159 = vpop.permute.xlu0 %158
    %160 = vrot.lane.b32.xlu0 %v150, 126
    %v161 = vpop.permute.xlu0 %160
    %162 = vrot.lane.b32.xlu0 %v151, 126
    %v163 = vpop.permute.xlu0 %162
    %v164 = vrot.slane %v157, 4
    %v165 = vrot.slane %v159, 4
    %v166 = vrot.slane %v161, 4
    %v167 = vrot.slane %v163, 4
    %v168 = vsel %vm119, %v164, %v165
    %vm169 = vcmask 1031168
    %v170 = vsel %vm169, %v157, %v168
    %v171 = vsel %vm119, %v166, %v167
    %v172 = vsel %vm169, %v161, %v171
    %v175 = vadd.f32 %v127, %v170
    %v176 = vadd.f32 %v128, %v172
    %s177 = scalar_lea.vmem %s1, 12
    %v178 = vld [vmem:[%s177] sm:$0xf]
    %180 = vset.pattern.permute.xlu0 0
    %181 = vperm.xlu0 %180, %v178
    %v182 = vpop.permute.xlu0 %181
    %v184 = vmul.f32 %v182, %v27
    %v185 = vmul.f32 %v182, %v28
    %v186 = vld [vmem:[#allocation2] sm:$0xff]
    %v187 = vld [vmem:[#allocation2 + $0x8] sm:$0xf]
    %v188 = vld [vmem:[#allocation2 + $0xc] sm:$0xff]
    %v189 = vld [vmem:[#allocation2 + $0x14] sm:$0xf]
    %v192 = vcombine.low %v184, %v185
    %193 = vrot.lane.b32.xlu0 %v192, 16
    %v194 = vpop.permute.xlu0 %193
    %v195 = vrot.slane %v194, 4
    %vm196 = vcmask 130048
    %v197 = vsel %vm196, %v195, %v194
    %v200 = vmul.f32 %v186, %v197
    %v201 = vmul.f32 %v187, %v195
    %v202 = vmul.f32 %v188, %v197
    %v203 = vmul.f32 %v189, %v195
    %208 = vrot.lane.b32.xlu0 %v200, 112
    %v209 = vpop.permute.xlu0 %208
    %210 = vrot.lane.b32.xlu0 %v201, 112
    %v211 = vpop.permute.xlu0 %210
    %212 = vrot.lane.b32.xlu0 %v202, 112
    %v213 = vpop.permute.xlu0 %212
    %214 = vrot.lane.b32.xlu0 %v203, 112
    %v215 = vpop.permute.xlu0 %214
    %v216 = vrot.slane %v209, 4
    %v217 = vrot.slane %v211, 4
    %v218 = vrot.slane %v213, 4
    %v219 = vrot.slane %v215, 4
    %v220 = vsel %vm119, %v216, %v217
    %vm221 = vcmask 916480
    %v222 = vsel %vm221, %v209, %v220
    %v223 = vsel %vm119, %v218, %v219
    %v224 = vsel %vm221, %v213, %v223
    %v227 = vadd.f32 %v175, %v222
    %v228 = vadd.f32 %v176, %v224
    %s229 = scalar_lea.vmem %s1, 16
    %v230 = vld [vmem:[%s229] sm:$0xf]
    %232 = vset.pattern.permute.xlu0 0
    %233 = vperm.xlu0 %232, %v230
    %v234 = vpop.permute.xlu0 %233
    %v236 = vunpack.c.l.s4 839922192
    %v237 = vunpack.c.0.s8 %v236
    %v238 = vlaneseq
    %v239 = vshrl.u32 %v238, 7
    %v240 = vsub.s32 %v237, %v239
    %v241 = vrot.slane %v234, %v240
    %v243 = vmul.f32 %v186, %v241
    %v244 = vmul.f32 %v187, %v241
    %v245 = vmul.f32 %v188, %v241
    %v246 = vmul.f32 %v189, %v241
    %251 = vrot.lane.b32.xlu0 %v243, 111
    %v252 = vpop.permute.xlu0 %251
    %253 = vrot.lane.b32.xlu0 %v244, 111
    %v254 = vpop.permute.xlu0 %253
    %255 = vrot.lane.b32.xlu0 %v245, 111
    %v256 = vpop.permute.xlu0 %255
    %257 = vrot.lane.b32.xlu0 %v246, 111
    %v258 = vpop.permute.xlu0 %257
    %v259 = vrot.slane %v252, 4
    %v260 = vrot.slane %v254, 4
    %v261 = vrot.slane %v256, 4
    %v262 = vrot.slane %v258, 4
    %v263 = vsel %vm119, %v259, %v260
    %vm264 = vcmask 908288
    %v265 = vsel %vm264, %v252, %v263
    %v266 = vsel %vm119, %v261, %v262
    %v267 = vsel %vm264, %v256, %v266
    %v270 = vadd.f32 %v227, %v265
    %v271 = vadd.f32 %v228, %v267
    %s272 = scalar_lea.vmem %s1, 20
    %v273 = vld [vmem:[%s272] sm:$0xf]
    %275 = vset.pattern.permute.xlu0 0
    %276 = vperm.xlu0 %275, %v273
    %v277 = vpop.permute.xlu0 %276
    %v279 = vmul.f32 %v277, %v33
    %v280 = vmul.f32 %v277, %v34
    %v283 = vcombine.low %v279, %v280
    %284 = vrot.lane.b32.xlu0 %v283, 18
    %v285 = vpop.permute.xlu0 %284
    %v286 = vrot.slane %v285, 4
    %vm287 = vcmask 146432
    %v288 = vsel %vm287, %v286, %v285
    %v291 = vmul.f32 %v186, %v288
    %v292 = vmul.f32 %v187, %v286
    %v293 = vmul.f32 %v188, %v288
    %v294 = vmul.f32 %v189, %v286
    %299 = vrot.lane.b32.xlu0 %v291, 110
    %v300 = vpop.permute.xlu0 %299
    %301 = vrot.lane.b32.xlu0 %v292, 110
    %v302 = vpop.permute.xlu0 %301
    %303 = vrot.lane.b32.xlu0 %v293, 110
    %v304 = vpop.permute.xlu0 %303
    %305 = vrot.lane.b32.xlu0 %v294, 110
    %v306 = vpop.permute.xlu0 %305
    %v307 = vrot.slane %v300, 4
    %v308 = vrot.slane %v302, 4
    %v309 = vrot.slane %v304, 4
    %v310 = vrot.slane %v306, 4
    %v311 = vsel %vm119, %v307, %v308
    %vm312 = vcmask 900096
    %v313 = vsel %vm312, %v300, %v311
    %v314 = vsel %vm119, %v309, %v310
    %v315 = vsel %vm312, %v304, %v314
    %v318 = vadd.f32 %v270, %v313
    %v319 = vadd.f32 %v271, %v315
    %s320 = scalar_lea.vmem %s1, 24
    %v321 = vld [vmem:[%s320] sm:$0xf]
    %323 = vset.pattern.permute.xlu0 0
    %324 = vperm.xlu0 %323, %v321
    %v325 = vpop.permute.xlu0 %324
    %v327 = vmul.f32 %v325, %v27
    %v328 = vmul.f32 %v325, %v28
    %v329 = vld [vmem:[#allocation2] sm:$0xff]
    %v330 = vld [vmem:[#allocation2 + $0x8] sm:$0xf]
    %v331 = vld [vmem:[#allocation2 + $0xc] sm:$0xff]
    %v332 = vld [vmem:[#allocation2 + $0x14] sm:$0xf]
    %v335 = vcombine.low %v327, %v328
    %336 = vrot.lane.b32.xlu0 %v335, 32
    %v337 = vpop.permute.xlu0 %336
    %v338 = vrot.slane %v337, 4
    %vm339 = vcmask 261120
    %v340 = vsel %vm339, %v338, %v337
    %v343 = vmul.f32 %v329, %v340
    %v344 = vmul.f32 %v330, %v338
    %v345 = vmul.f32 %v331, %v340
    %v346 = vmul.f32 %v332, %v338
    %351 = vrot.lane.b32.xlu0 %v343, 96
    %v352 = vpop.permute.xlu0 %351
    %353 = vrot.lane.b32.xlu0 %v344, 96
    %v354 = vpop.permute.xlu0 %353
    %355 = vrot.lane.b32.xlu0 %v345, 96
    %v356 = vpop.permute.xlu0 %355
    %357 = vrot.lane.b32.xlu0 %v346, 96
    %v358 = vpop.permute.xlu0 %357
    %v359 = vrot.slane %v352, 4
    %v360 = vrot.slane %v354, 4
    %v361 = vrot.slane %v356, 4
    %v362 = vrot.slane %v358, 4
    %v363 = vsel %vm119, %v359, %v360
    %vm364 = vcmask 785408
    %v365 = vsel %vm364, %v352, %v363
    %v366 = vsel %vm119, %v361, %v362
    %v367 = vsel %vm364, %v356, %v366
    %v370 = vadd.f32 %v318, %v365
    %v371 = vadd.f32 %v319, %v367
    %s372 = scalar_lea.vmem %s1, 28
    %v373 = vld [vmem:[%s372] sm:$0xf]
    %375 = vset.pattern.permute.xlu0 0
    %376 = vperm.xlu0 %375, %v373
    %v377 = vpop.permute.xlu0 %376
    %v379 = vunpack.c.l.s4 839922192
    %v380 = vunpack.c.0.s8 %v379
    %v381 = vlaneseq
    %v382 = vshrl.u32 %v381, 7
    %v383 = vsub.s32 %v380, %v382
    %v384 = vrot.slane %v377, %v383
    %v386 = vmul.f32 %v329, %v384
    %v387 = vmul.f32 %v330, %v384
    %v388 = vmul.f32 %v331, %v384
    %v389 = vmul.f32 %v332, %v384
    %394 = vrot.lane.b32.xlu0 %v386, 95
    %v395 = vpop.permute.xlu0 %394
    %396 = vrot.lane.b32.xlu0 %v387, 95
    %v397 = vpop.permute.xlu0 %396
    %398 = vrot.lane.b32.xlu0 %v388, 95
    %v399 = vpop.permute.xlu0 %398
    %400 = vrot.lane.b32.xlu0 %v389, 95
    %v401 = vpop.permute.xlu0 %400
    %v402 = vrot.slane %v395, 4
    %v403 = vrot.slane %v397, 4
    %v404 = vrot.slane %v399, 4
    %v405 = vrot.slane %v401, 4
    %v406 = vsel %vm119, %v402, %v403
    %vm407 = vcmask 777216
    %v408 = vsel %vm407, %v395, %v406
    %v409 = vsel %vm119, %v404, %v405
    %v410 = vsel %vm407, %v399, %v409
    %v413 = vadd.f32 %v370, %v408
    %v414 = vadd.f32 %v371, %v410
    %s415 = scalar_lea.vmem %s1, 32
    %v416 = vld [vmem:[%s415] sm:$0xf]
    %418 = vset.pattern.permute.xlu0 0
    %419 = vperm.xlu0 %418, %v416
    %v420 = vpop.permute.xlu0 %419
    %v422 = vmul.f32 %v420, %v33
    %v423 = vmul.f32 %v420, %v34
    %v426 = vcombine.low %v422, %v423
    %427 = vrot.lane.b32.xlu0 %v426, 34
    %v428 = vpop.permute.xlu0 %427
    %v429 = vrot.slane %v428, 4
    %vm430 = vcmask 277504
    %v431 = vsel %vm430, %v429, %v428
    %v434 = vmul.f32 %v329, %v431
    %v435 = vmul.f32 %v330, %v429
    %v436 = vmul.f32 %v331, %v431
    %v437 = vmul.f32 %v332, %v429
    %442 = vrot.lane.b32.xlu0 %v434, 94
    %v443 = vpop.permute.xlu0 %442
    %444 = vrot.lane.b32.xlu0 %v435, 94
    %v445 = vpop.permute.xlu0 %444
    %446 = vrot.lane.b32.xlu0 %v436, 94
    %v447 = vpop.permute.xlu0 %446
    %448 = vrot.lane.b32.xlu0 %v437, 94
    %v449 = vpop.permute.xlu0 %448
    %v450 = vrot.slane %v443, 4
    %v451 = vrot.slane %v445, 4
    %v452 = vrot.slane %v447, 4
    %v453 = vrot.slane %v449, 4
    %v454 = vsel %vm119, %v450, %v451
    %vm455 = vcmask 769024
    %v456 = vsel %vm455, %v443, %v454
    %v457 = vsel %vm119, %v452, %v453
    %v458 = vsel %vm455, %v447, %v457
    %v461 = vadd.f32 %v413, %v456
    %v462 = vadd.f32 %v414, %v458
    %v463 = vld [vmem:[%s2] sm:$0xf]
    %465 = vset.pattern.permute.xlu0 0
    %466 = vperm.xlu0 %465, %v463
    %v467 = vpop.permute.xlu0 %466
    %v469 = vunpack.c.l.s4 839922192
    %v470 = vunpack.c.0.s8 %v469
    %v471 = vlaneseq
    %v472 = vshrl.u32 %v471, 7
    %v473 = vsub.s32 %v470, %v472
    %v474 = vrot.slane %v467, %v473
    %v476 = vadd.f32 %v461, %v474
    %v477 = vadd.f32 %v462, %v474
    %v478 = vmax.f32 %v476, 0.0
    %v479 = vmax.f32 %v477, 0.0
    %480 = vst [vmem:[#allocation3] sm:$0xff] %v478
    %481 = vst [vmem:[#allocation3 + $0x8] sm:$0xff] %v479
    // Predicated region
    $region18: #{tpu_custom_call.1} parent=1 // pred_check
      _
    $region19: #{tpu_custom_call.1} parent=1 // pred_check_branch
      %483 = sbr.rel (0) target = $region21
    $region20: #{tpu_custom_call.1} parent=1 // pred_region
      %s485 = ssub.s32 256, 256
      %486 = vsyncadd [#allocation4], %s485
      %s487 = sshll.u32 [#allocation3], 4
      %s488 = int_to_ptr.vmem [resolvable:$true] %s487
      %493 = dma.vmem_to_hbm [thread:$0]  %s488, 256, %s4, [#allocation4], 128, 128, 8
    $region21: #{tpu_custom_call.1} parent=1 // pred_fallthru
      _
    // Predicated region
    $region22: #{tpu_custom_call.1} parent=1 // pred_check
      _
    $region23: #{tpu_custom_call.1} parent=1 // pred_check_branch
      %495 = sbr.rel (0) target = $region25
    $region24: #{tpu_custom_call.1} parent=1 // pred_region
      %496 = dma.done [#allocation4], 256
    $region25: #{tpu_custom_call.1} parent=1 // pred_fallthru
      _
    %497 = vsyncpa [#allocation4], 1

</llo_original>
